<compile_context>
chip_gen: v5e
topology: v5e:2x2
jax: 0.10.0
libtpu: 0.0.40
codegen_flags: <defaults>
</compile_context>

<pallas_src>
import jax
import jax.numpy as jnp
from jax import lax
from jax.experimental import pallas as pl
from jax.experimental.pallas import tpu as pltpu


LANE_WIDTH = 512        # lanes per row (multiple of 128); lane-dense blocks
SUBLANE = 8             # sublane granularity for the row dimension
ROW_TILE = 1024         # max rows per step: 2 * 1024 * 512 * 4 B = 4 MiB block
VMEM_LIMIT = 48 << 20   # 2x-buffered in+out (16 MiB) + tile-sized temporaries


def _cexp_kernel(x_ref, o_ref):
    # x_ref / o_ref: [2, tile_r, LANE_WIDTH] float32; plane 0 = real, 1 = imag.
    re = x_ref[0]
    im = x_ref[1]
    mag = jnp.exp(re)                 # EUP transcendental
    o_ref[0] = mag * jnp.cos(im)      # real part of exp(a+ib)
    o_ref[1] = mag * jnp.sin(im)      # imag part of exp(a+ib)


def _cexp_planes(planes, tile_r):
    """planes: float32 [2, R, LANE_WIDTH] with R a multiple of tile_r."""
    rows = planes.shape[1]
    grid = (rows // tile_r,)
    spec = pl.BlockSpec((2, tile_r, LANE_WIDTH), lambda i: (0, i, 0))
    n_elems = rows * LANE_WIDTH       # padded complex element count
    return pl.pallas_call(
        _cexp_kernel,
        out_shape=jax.ShapeDtypeStruct((2, rows, LANE_WIDTH), jnp.float32),
        grid_spec=pltpu.PrefetchScalarGridSpec(
            num_scalar_prefetch=0,
            grid=grid,
            in_specs=[spec],
            out_specs=spec,
        ),
        compiler_params=pltpu.CompilerParams(
            # Single flat axis; "parallel" + >=2 steps lets multi-TC parts
            # (v7x) shard the grid across cores.
            dimension_semantics=("parallel",),
            vmem_limit_bytes=VMEM_LIMIT,
        ),
        cost_estimate=pl.CostEstimate(
            flops=2 * n_elems,              # two VPU multiplies per element
            transcendentals=3 * n_elems,    # exp + cos + sin
            bytes_accessed=16 * n_elems,    # 8 B in + 8 B out per element
        ),
    )(planes)


def _round_up(x, m):
    return ((x + m - 1) // m) * m


def _ceil_div(a, b):
    return -(-a // b)


def _complex_exponential_impl(x):
    """Elementwise complex exp of a complex64 array of any shape."""
    if x.dtype != jnp.complex64:
        # TODO(synk): complex128 would silently lose precision in f32; reject.
        raise NotImplementedError("complex_exponential supports complex64 only")

    orig_shape = x.shape
    n = x.size
    if n == 0:
        return x

    # --- static tile geometry -------------------------------------------
    rows = _round_up(max(1, _ceil_div(n, LANE_WIDTH)), SUBLANE)
    n_steps = _ceil_div(rows, ROW_TILE)
    if rows >= 2 * SUBLANE:
        n_steps = max(n_steps, 2)           # keep both TCs fed on 2-core parts
    tile_r = _round_up(_ceil_div(rows, n_steps), SUBLANE)   # <= ROW_TILE
    rows_pad = n_steps * tile_r
    n_pad = rows_pad * LANE_WIDTH

    # --- split into stacked planes (single fused copy pass under jit) ----
    re = jnp.real(x).reshape(-1).astype(jnp.float32)
    im = jnp.imag(x).reshape(-1).astype(jnp.float32)
    planes = jnp.stack([re, im])                          # [2, n]
    if n_pad != n:
        planes = jnp.pad(planes, ((0, 0), (0, n_pad - n)))
    planes = planes.reshape(2, rows_pad, LANE_WIDTH)

    # --- kernel -----------------------------------------------------------
    out = _cexp_planes(planes, tile_r)                    # [2, rows_pad, W]

    # --- recombine (single fused copy pass under jit) ----------------------
    out = out.reshape(2, -1)[:, :n]
    out_re = out[0].reshape(orig_shape)
    out_im = out[1].reshape(orig_shape)
    return lax.complex(out_re, out_im)


# jit so all the glue (real/imag split+pad on the way in, slice+recombine on
# the way out) fuses into single copy passes around the pallas_call.
complex_exponential = jax.jit(_complex_exponential_impl)


if __name__ == "__main__":
    key = jax.random.PRNGKey(0)
    k_re, k_im, k_re2, k_im2 = jax.random.split(key, 4)

    # Small NCHW complex64 input, matching the module's intended use.
    shape = (2, 4, 16, 16)
    x = lax.complex(
        jax.random.normal(k_re, shape, dtype=jnp.float32),
        jax.random.normal(k_im, shape, dtype=jnp.float32),
    )
    out = jax.block_until_ready(complex_exponential(x))
    ref = jnp.exp(x)
    assert out.shape == x.shape and out.dtype == x.dtype
    assert jnp.allclose(out, ref, atol=1e-5, rtol=1e-5)

    # A non-aligned shape to exercise the padding / multi-step grid path.
    shape2 = (3, 5, 17, 19)
    y = lax.complex(
        jax.random.normal(k_re2, shape2, dtype=jnp.float32),
        jax.random.normal(k_im2, shape2, dtype=jnp.float32),
    )
    out2 = jax.block_until_ready(complex_exponential(y))
    ref2 = jnp.exp(y)
    assert out2.shape == y.shape and out2.dtype == y.dtype
    assert jnp.allclose(out2, ref2, atol=1e-5, rtol=1e-5)

    print("KERNEL_OK")
</pallas_src>

<mosaic_0001>
module attributes {stable_mosaic.version = 11 : i64} {
  func.func @_cexp_kernel(%arg0: i32, %arg1: memref<2x8x512xf32, #tpu.memory_space<vmem>>, %arg2: memref<2x8x512xf32, #tpu.memory_space<vmem>>) attributes {dimension_semantics = [#tpu.dimension_semantics<parallel>], iteration_bounds = array<i64: 1>, scalar_prefetch = 0 : i64, scratch_operands = 0 : i64, tpu.core_type = #tpu.core_type<tc>, window_params = [{transform_indices = @transform_0, window_bounds = array<i64: 2, 8, 512>}, {transform_indices = @transform_1, window_bounds = array<i64: 2, 8, 512>}]} {
    %c0 = arith.constant 0 : index
    %c0_0 = arith.constant 0 : index
    %c0_1 = arith.constant 0 : index
    %0 = vector.load %arg1[%c0, %c0_0, %c0_1] : memref<2x8x512xf32, #tpu.memory_space<vmem>>, vector<1x8x512xf32>
    %1 = vector.shape_cast %0 : vector<1x8x512xf32> to vector<8x512xf32>
    %c1 = arith.constant 1 : index
    %c0_2 = arith.constant 0 : index
    %c0_3 = arith.constant 0 : index
    %2 = vector.load %arg1[%c1, %c0_2, %c0_3] : memref<2x8x512xf32, #tpu.memory_space<vmem>>, vector<1x8x512xf32>
    %3 = vector.shape_cast %2 : vector<1x8x512xf32> to vector<8x512xf32>
    %4 = math.exp %1 : vector<8x512xf32>
    %5 = math.cos %3 : vector<8x512xf32>
    %6 = arith.mulf %4, %5 : vector<8x512xf32>
    %c0_4 = arith.constant 0 : index
    %c0_5 = arith.constant 0 : index
    %c0_6 = arith.constant 0 : index
    %7 = vector.load %arg2[%c0_4, %c0_5, %c0_6] : memref<2x8x512xf32, #tpu.memory_space<vmem>>, vector<1x8x512xf32>
    %8 = vector.shape_cast %7 : vector<1x8x512xf32> to vector<8x512xf32>
    %9 = vector.shape_cast %6 : vector<8x512xf32> to vector<1x8x512xf32>
    tpu.vector_store %arg2[%c0_4, %c0_5, %c0_6], %9 {strides = array<i32>} : memref<2x8x512xf32, #tpu.memory_space<vmem>>, vector<1x8x512xf32>,
    %10 = math.sin %3 : vector<8x512xf32>
    %11 = arith.mulf %4, %10 : vector<8x512xf32>
    %c1_7 = arith.constant 1 : index
    %c0_8 = arith.constant 0 : index
    %c0_9 = arith.constant 0 : index
    %12 = vector.load %arg2[%c1_7, %c0_8, %c0_9] : memref<2x8x512xf32, #tpu.memory_space<vmem>>, vector<1x8x512xf32>
    %13 = vector.shape_cast %12 : vector<1x8x512xf32> to vector<8x512xf32>
    %14 = vector.shape_cast %11 : vector<8x512xf32> to vector<1x8x512xf32>
    tpu.vector_store %arg2[%c1_7, %c0_8, %c0_9], %14 {strides = array<i32>} : memref<2x8x512xf32, #tpu.memory_space<vmem>>, vector<1x8x512xf32>,
    return
  }
  func.func @transform_0(%arg0: i32) -> (i32, i32, i32) {
    %c0_i32 = arith.constant 0 : i32
    %c0_i32_0 = arith.constant 0 : i32
    %c0_i32_1 = arith.constant 0 : i32
    return %c0_i32, %arg0, %c0_i32_0 : i32, i32, i32
  }
  func.func @transform_1(%arg0: i32) -> (i32, i32, i32) {
    %c0_i32 = arith.constant 0 : i32
    %c0_i32_0 = arith.constant 0 : i32
    %c0_i32_1 = arith.constant 0 : i32
    return %c0_i32, %arg0, %c0_i32_0 : i32, i32, i32
  }
}

</mosaic_0001>

<llo_original>
// kernel: custom-call
$region0: #{custom-call}
  %s0 = inlined_call_operand.hbm [shape: c64[2,4,16,16], index: 0, kind: input, shape index: {}]
  %s1 = inlined_call_operand.vmem [shape: f32[2,4,16,16], index: 1, kind: output, shape index: {}]
  $region1: #{custom-call} parent=0
    #allocation0 [shape = 's32[1]{0}', space=sflag, size = 0x4, scoped, tag = 'scoped memory for custom-call']
    %2 = vsyncpa [#allocation0], 0
    %s4 = sshll.u32 %s0, 4
    %s5 = int_to_ptr.hbm [resolvable:$true] %s4
    %s6 = sshll.u32 %s1, 4
    %s7 = int_to_ptr.vmem [resolvable:$true] %s6
    %9 = dma.hbm_to_vmem [thread:$0]  %s5, 2048, %s7, [#allocation0]
    %11 = dma.done [#allocation0], 2048
    %12 = vsyncpa [#allocation0], 1

// kernel: custom-call.1
$region0: #{custom-call.1}
  %s0 = inlined_call_operand.hbm [shape: c64[2,4,16,16], index: 0, kind: input, shape index: {}]
  %s1 = inlined_call_operand.vmem [shape: f32[2,4,16,16], index: 1, kind: output, shape index: {}]
  %s2 = scalar_lea.hbm %s0, 128
  $region1: #{custom-call.1} parent=0
    #allocation0 [shape = 's32[1]{0}', space=sflag, size = 0x4, scoped, tag = 'scoped memory for custom-call.1']
    %3 = vsyncpa [#allocation0], 0
    %s5 = sshll.u32 %s2, 4
    %s6 = int_to_ptr.hbm [resolvable:$true] %s5
    %s7 = sshll.u32 %s1, 4
    %s8 = int_to_ptr.vmem [resolvable:$true] %s7
    %10 = dma.hbm_to_vmem [thread:$0]  %s6, 2048, %s8, [#allocation0]
    %12 = dma.done [#allocation0], 2048
    %13 = vsyncpa [#allocation0], 1

// kernel: squeeze.3
$region0: #{squeeze.3}
  %s0 = inlined_call_operand.vmem [shape: f32[2048], index: 0, kind: input, shape index: {}]
  %s1 = inlined_call_operand.vmem [shape: f32[2,4,16,16], index: 1, kind: output, shape index: {}]
  %v2 = vld [vmem:[%s0] sm:$0xff]
  %vm3 = vcmask 130048
  %4 = vst.msk [vmem:[%s1] ss:$8 sm:$0xf] %vm3, %v2
  %5 = vst.msk [vmem:[%s1] ss:$8 sm:$0xf0] %vm3, %v2
  %s6 = scalar_lea.vmem %s0, 8
  %v7 = vld [vmem:[%s6] sm:$0xff]
  %vm8 = vcmask 130048
  %s9 = scalar_lea.vmem %s1, 64
  %10 = vst.msk [vmem:[%s9] ss:$8 sm:$0xf] %vm8, %v7
  %s11 = scalar_lea.vmem %s1, 64
  %12 = vst.msk [vmem:[%s11] ss:$8 sm:$0xf0] %vm8, %v7
  %v13 = vld [vmem:[%s0] sm:$0xff]
  %14 = vrot.lane.b32.xlu0 %v13, 112
  %v15 = vpop.permute.xlu0 %14
  %vm16 = vcmask 130048
  %s17 = scalar_lea.vmem %s1, 1
  %18 = vst.msk [vmem:[%s17] ss:$8 sm:$0xf] %vm16, %v15
  %s19 = scalar_lea.vmem %s1, 1
  %20 = vst.msk [vmem:[%s19] ss:$8 sm:$0xf0] %vm16, %v15
  %s21 = scalar_lea.vmem %s0, 8
  %v22 = vld [vmem:[%s21] sm:$0xff]
  %23 = vrot.lane.b32.xlu0 %v22, 112
  %v24 = vpop.permute.xlu0 %23
  %vm25 = vcmask 130048
  %s26 = scalar_lea.vmem %s1, 65
  %27 = vst.msk [vmem:[%s26] ss:$8 sm:$0xf] %vm25, %v24
  %s28 = scalar_lea.vmem %s1, 65
  %29 = vst.msk [vmem:[%s28] ss:$8 sm:$0xf0] %vm25, %v24
  %v30 = vld [vmem:[%s0] sm:$0xff]
  %31 = vrot.lane.b32.xlu0 %v30, 96
  %v32 = vpop.permute.xlu0 %31
  %vm33 = vcmask 130048
  %s34 = scalar_lea.vmem %s1, 2
  %35 = vst.msk [vmem:[%s34] ss:$8 sm:$0xf] %vm33, %v32
  %s36 = scalar_lea.vmem %s1, 2
  %37 = vst.msk [vmem:[%s36] ss:$8 sm:$0xf0] %vm33, %v32
  %s38 = scalar_lea.vmem %s0, 8
  %v39 = vld [vmem:[%s38] sm:$0xff]
  %40 = vrot.lane.b32.xlu0 %v39, 96
  %v41 = vpop.permute.xlu0 %40
  %vm42 = vcmask 130048
  %s43 = scalar_lea.vmem %s1, 66
  %44 = vst.msk [vmem:[%s43] ss:$8 sm:$0xf] %vm42, %v41
  %s45 = scalar_lea.vmem %s1, 66
  %46 = vst.msk [vmem:[%s45] ss:$8 sm:$0xf0] %vm42, %v41
  %v47 = vld [vmem:[%s0] sm:$0xff]
  %48 = vrot.lane.b32.xlu0 %v47, 80
  %v49 = vpop.permute.xlu0 %48
  %vm50 = vcmask 130048
  %s51 = scalar_lea.vmem %s1, 3
  %52 = vst.msk [vmem:[%s51] ss:$8 sm:$0xf] %vm50, %v49
  %s53 = scalar_lea.vmem %s1, 3
  %54 = vst.msk [vmem:[%s53] ss:$8 sm:$0xf0] %vm50, %v49
  %s55 = scalar_lea.vmem %s0, 8
  %v56 = vld [vmem:[%s55] sm:$0xff]
  %57 = vrot.lane.b32.xlu0 %v56, 80
  %v58 = vpop.permute.xlu0 %57
  %vm59 = vcmask 130048
  %s60 = scalar_lea.vmem %s1, 67
  %61 = vst.msk [vmem:[%s60] ss:$8 sm:$0xf] %vm59, %v58
  %s62 = scalar_lea.vmem %s1, 67
  %63 = vst.msk [vmem:[%s62] ss:$8 sm:$0xf0] %vm59, %v58
  %v64 = vld [vmem:[%s0] sm:$0xff]
  %65 = vrot.lane.b32.xlu0 %v64, 64
  %v66 = vpop.permute.xlu0 %65
  %vm67 = vcmask 130048
  %s68 = scalar_lea.vmem %s1, 4
  %69 = vst.msk [vmem:[%s68] ss:$8 sm:$0xf] %vm67, %v66
  %s70 = scalar_lea.vmem %s1, 4
  %71 = vst.msk [vmem:[%s70] ss:$8 sm:$0xf0] %vm67, %v66
  %s72 = scalar_lea.vmem %s0, 8
  %v73 = vld [vmem:[%s72] sm:$0xff]
  %74 = vrot.lane.b32.xlu0 %v73, 64
  %v75 = vpop.permute.xlu0 %74
  %vm76 = vcmask 130048
  %s77 = scalar_lea.vmem %s1, 68
  %78 = vst.msk [vmem:[%s77] ss:$8 sm:$0xf] %vm76, %v75
  %s79 = scalar_lea.vmem %s1, 68
  %80 = vst.msk [vmem:[%s79] ss:$8 sm:$0xf0] %vm76, %v75
  %v81 = vld [vmem:[%s0] sm:$0xff]
  %82 = vrot.lane.b32.xlu0 %v81, 48
  %v83 = vpop.permute.xlu0 %82
  %vm84 = vcmask 130048
  %s85 = scalar_lea.vmem %s1, 5
  %86 = vst.msk [vmem:[%s85] ss:$8 sm:$0xf] %vm84, %v83
  %s87 = scalar_lea.vmem %s1, 5
  %88 = vst.msk [vmem:[%s87] ss:$8 sm:$0xf0] %vm84, %v83
  %s89 = scalar_lea.vmem %s0, 8
  %v90 = vld [vmem:[%s89] sm:$0xff]
  %91 = vrot.lane.b32.xlu0 %v90, 48
  %v92 = vpop.permute.xlu0 %91
  %vm93 = vcmask 130048
  %s94 = scalar_lea.vmem %s1, 69
  %95 = vst.msk [vmem:[%s94] ss:$8 sm:$0xf] %vm93, %v92
  %s96 = scalar_lea.vmem %s1, 69
  %97 = vst.msk [vmem:[%s96] ss:$8 sm:$0xf0] %vm93, %v92
  %v98 = vld [vmem:[%s0] sm:$0xff]
  %99 = vrot.lane.b32.xlu0 %v98, 32
  %v100 = vpop.permute.xlu0 %99
  %vm101 = vcmask 130048
  %s102 = scalar_lea.vmem %s1, 6
  %103 = vst.msk [vmem:[%s102] ss:$8 sm:$0xf] %vm101, %v100
  %s104 = scalar_lea.vmem %s1, 6
  %105 = vst.msk [vmem:[%s104] ss:$8 sm:$0xf0] %vm101, %v100
  %s106 = scalar_lea.vmem %s0, 8
  %v107 = vld [vmem:[%s106] sm:$0xff]
  %108 = vrot.lane.b32.xlu0 %v107, 32
  %v109 = vpop.permute.xlu0 %108
  %vm110 = vcmask 130048
  %s111 = scalar_lea.vmem %s1, 70
  %112 = vst.msk [vmem:[%s111] ss:$8 sm:$0xf] %vm110, %v109
  %s113 = scalar_lea.vmem %s1, 70
  %114 = vst.msk [vmem:[%s113] ss:$8 sm:$0xf0] %vm110, %v109
  %v115 = vld [vmem:[%s0] sm:$0xff]
  %116 = vrot.lane.b32.xlu0 %v115, 16
  %v117 = vpop.permute.xlu0 %116
  %vm118 = vcmask 130048
  %s119 = scalar_lea.vmem %s1, 7
  %120 = vst.msk [vmem:[%s119] ss:$8 sm:$0xf] %vm118, %v117
  %s121 = scalar_lea.vmem %s1, 7
  %122 = vst.msk [vmem:[%s121] ss:$8 sm:$0xf0] %vm118, %v117
  %s123 = scalar_lea.vmem %s0, 8
  %v124 = vld [vmem:[%s123] sm:$0xff]
  %125 = vrot.lane.b32.xlu0 %v124, 16
  %v126 = vpop.permute.xlu0 %125
  %vm127 = vcmask 130048
  %s128 = scalar_lea.vmem %s1, 71
  %129 = vst.msk [vmem:[%s128] ss:$8 sm:$0xf] %vm127, %v126
  %s130 = scalar_lea.vmem %s1, 71
  %131 = vst.msk [vmem:[%s130] ss:$8 sm:$0xf0] %vm127, %v126

// kernel: custom-call.2
$region0: #{custom-call.2}
  %s0 = inlined_call_operand.vmem [shape: f32[2,4,16,16], index: 0, kind: input, shape index: {}]
  %s1 = inlined_call_operand.vmem [shape: f32[2,4,16,16], index: 1, kind: input, shape index: {}]
  %s2 = inlined_call_operand.hbm [shape: c64[2,4,16,16], index: 2, kind: output, shape index: {}]
  %s3 = scalar_lea.hbm %s2, 128
  $region1: #{custom-call.2} parent=0
    #allocation0 [shape = 's32[1]{0}', space=sflag, size = 0x4, scoped, tag = 'scoped memory for custom-call.2']
    %4 = vsyncpa [#allocation0], 0
    %s6 = sshll.u32 %s0, 4
    %s7 = int_to_ptr.vmem [resolvable:$true] %s6
    %s8 = sshll.u32 %s2, 4
    %s9 = int_to_ptr.hbm [resolvable:$true] %s8
    %11 = dma.vmem_to_hbm [thread:$0]  %s7, 2048, %s9, [#allocation0]
    %13 = dma.done [#allocation0], 2048
    %14 = vsyncpa [#allocation0], 1
  $region2: #{custom-call.2} parent=0
    #allocation1 [shape = 's32[1]{0}', space=sflag, size = 0x4, scoped, tag = 'scoped memory for custom-call.2']
    %15 = vsyncpa [#allocation1], 0
    %s17 = sshll.u32 %s1, 4
    %s18 = int_to_ptr.vmem [resolvable:$true] %s17
    %s19 = sshll.u32 %s3, 4
    %s20 = int_to_ptr.hbm [resolvable:$true] %s19
    %22 = dma.vmem_to_hbm [thread:$0]  %s18, 2048, %s20, [#allocation1]
    %24 = dma.done [#allocation1], 2048
    %25 = vsyncpa [#allocation1], 1

// kernel: _complex_exponential_impl.1
$region0: #{_complex_exponential_impl.1}
  #allocation0 [shape = 'u32[]', space=smem, size = 0x4, offset = 0x4, fixed_abs, tag = 'smem constant byte address 0x4 - core index']
  #allocation1 [shape = 'u32[72,128]{1,0:T(1,128)}', space=vmem, size = 0x9000, scoped, tag = 'internal scratch']
  %s0 = inlined_call_operand.vmem [shape: f32[2,8,512], index: 0, kind: input, shape index: {}]
  %s1 = inlined_call_operand.vmem [shape: f32[2,8,512], index: 1, kind: output, shape index: {}]
  %s2 = sld [smem:[#allocation0]]
  $region14: #{_complex_exponential_impl.1} parent=0
    _
  %s4 = ssub.s32 1, %s2
  %s5 = scalar_select 0, %s4, %s2
  // Predicated region
  $region2: #{_complex_exponential_impl.1} parent=0 // pred_check
    _
  $region3: #{_complex_exponential_impl.1} parent=0 // pred_check_branch
    %7 = sbr.rel (0) target = $region5
  $region4: #{_complex_exponential_impl.1} parent=0 // pred_region
    _
  $region5: #{_complex_exponential_impl.1} parent=0 // pred_fallthru
    _
  %v8 = vld [vmem:[%s0] sm:$0xff]
  %v9 = vld [vmem:[%s0 + $0x8] sm:$0xff]
  %v10 = vld [vmem:[%s0 + $0x10] sm:$0xff]
  %v11 = vld [vmem:[%s0 + $0x18] sm:$0xff]
  %s12 = scalar_lea.vmem %s0, 32
  %v13 = vld [vmem:[%s12] sm:$0xff]
  %v14 = vld [vmem:[%s12 + $0x8] sm:$0xff]
  %v15 = vld [vmem:[%s12 + $0x10] sm:$0xff]
  %v16 = vld [vmem:[%s12 + $0x18] sm:$0xff]
  %v17 = vmul.f32 %v8, 1.442695
  %v18 = vpow.pop %v17
  %v19 = vmul.f32 %v9, 1.442695
  %v20 = vpow.pop %v19
  %v21 = vmul.f32 %v10, 1.442695
  %v22 = vpow.pop %v21
  %v23 = vmul.f32 %v11, 1.442695
  %v24 = vpow.pop %v23
  %v25 = vand.u32 2147483647, %v13
  %vm26 = vcmp.le.f32.partialorder %v25, 0.7853982
  %vm27 = vcmp.lt.s32.totalorder %v13, 0
  %v28 = vand.u32 %v13, 2139095040
  %v29 = vshrl.u32 %v28, 23
  %v30 = vsub.s32 %v29, 127
  %v31 = vand.u32 2147483647, %v13
  %v32 = vand.u32 %v31, 8388607
  %v33 = vor.u32 %v32, 8388608
  %v34 = vsub.s32 0, %v33
  %v35 = vadd.s32 %v30, 1
  %vm36 = vcmp.gt.s32.totalorder %v35, 0
  %v37 = vsel %vm36, %v35, 0
  %v38 = vshrl.u32 %v37, 5
  %v39 = vand.u32 %v37, 31
  %v40 = vsub.s32 32, %v39
  %v41 = vshrl.u32 683565275, %v40
  %v42 = vshll.u32 683565275, %v39
  %v43 = vshrl.u32 2475754826, %v40
  %v44 = vor.u32 %v42, %v43
  %v45 = vshll.u32 2475754826, %v39
  %v46 = vshrl.u32 2131351028, %v40
  %v47 = vor.u32 %v45, %v46
  %v48 = vshll.u32 2131351028, %v39
  %v49 = vshrl.u32 2102212464, %v40
  %v50 = vor.u32 %v48, %v49
  %v51 = vshll.u32 2102212464, %v39
  %v52 = vshrl.u32 920167782, %v40
  %v53 = vor.u32 %v51, %v52
  %v54 = vshll.u32 920167782, %v39
  %v55 = vshrl.u32 1326507024, %v40
  %v56 = vor.u32 %v54, %v55
  %vm57 = vcmp.lt.s32.totalorder %v38, 1
  %vm58 = vcmp.lt.s32.totalorder %v38, 2
  %vm59 = vcmp.lt.s32.totalorder %v38, 3
  %vm60 = vcmp.lt.s32.totalorder %v38, 4
  %v61 = vsel %vm57, %v41, %v44
  %v62 = vsel %vm60, %v50, 2102212464
  %v63 = vsel %vm59, %v47, %v62
  %v64 = vsel %vm58, %v61, %v63
  %v65 = vsel %vm57, %v44, %v47
  %v66 = vsel %vm60, %v53, 920167782
  %v67 = vsel %vm59, %v50, %v66
  %v68 = vsel %vm58, %v65, %v67
  %v69 = vsel %vm57, %v47, %v50
  %v70 = vsel %vm60, %v56, 1326507024
  %v71 = vsel %vm59, %v53, %v70
  %v72 = vsel %vm58, %v69, %v71
  %v73 = vshll.u32 %v33, 8
  %v74 = vand.u32 %v73, 65535
  %v75 = vshrl.u32 %v73, 16
  %v76 = vand.u32 %v72, 65535
  %v77 = vshrl.u32 %v72, 16
  %v78 = vmul.u32 %v74, %v76
  %v79 = vmul.u32 %v74, %v77
  %v80 = vmul.u32 %v75, %v76
  %v81 = vmul.u32 %v75, %v77
  %v82 = vshll.u32 %v79, 16
  %v83 = vshrl.u32 %v79, 16
  %v84 = vshll.u32 %v80, 16
  %v85 = vshrl.u32 %v80, 16
  %vm86 = vc.u32 %v78, %v82
  %v87 = vsel %vm86, 1, 0
  %v88 = vadd.s32 %v78, %v82
  %v89 = vadd.s32 %v81, %v87
  %vm90 = vc.u32 %v88, %v84
  %v91 = vsel %vm90, 1, 0
  %v92 = vadd.s32 %v88, %v84
  %v93 = vadd.s32 %v89, %v91
  %v94 = vadd.s32 %v93, %v83
  %v95 = vadd.s32 %v94, %v85
  %v96 = vand.u32 %v73, 65535
  %v97 = vshrl.u32 %v73, 16
  %v98 = vand.u32 %v68, 65535
  %v99 = vshrl.u32 %v68, 16
  %v100 = vmul.u32 %v96, %v98
  %v101 = vmul.u32 %v96, %v99
  %v102 = vmul.u32 %v97, %v98
  %v103 = vmul.u32 %v97, %v99
  %v104 = vshll.u32 %v101, 16
  %v105 = vshrl.u32 %v101, 16
  %v106 = vshll.u32 %v102, 16
  %v107 = vshrl.u32 %v102, 16
  %vm108 = vc.u32 %v100, %v104
  %v109 = vsel %vm108, 1, 0
  %v110 = vadd.s32 %v100, %v104
  %v111 = vadd.s32 %v103, %v109
  %vm112 = vc.u32 %v110, %v106
  %v113 = vsel %vm112, 1, 0
  %v114 = vadd.s32 %v110, %v106
  %v115 = vadd.s32 %v111, %v113
  %v116 = vadd.s32 %v115, %v105
  %v117 = vadd.s32 %v116, %v107
  %v118 = vmul.u32 %v73, %v64
  %v119 = vadd.s32 %v95, %v114
  %vm120 = vc.u32 %v95, %v114
  %v121 = vadd.s32 %v117, 1
  %v122 = vsel %vm120, %v121, %v117
  %v123 = vadd.s32 %v118, %v122
  %v124 = vadd.s32 %v123, 536870912
  %v125 = vshrl.u32 %v124, 30
  %v126 = vshll.u32 %v125, 30
  %v127 = vsub.s32 %v123, %v126
  %vm128 = vcmp.lt.s32.totalorder %v127, 0
  %v129 = vsub.s32 0, %v127
  %v130 = vsel %vm128, %v129, %v127
  %v131 = vclz %v130
  %v132 = vsub.s32 %v131, 2
  %vm133 = vcmp.gt.s32.totalorder 0, %v132
  %v134 = vsel %vm133, 0, %v132
  %v135 = vsub.s32 32, %v134
  %v136 = vshll.u32 %v127, %v134
  %v137 = vshrl.u32 %v119, %v135
  %v138 = vor.u32 %v136, %v137
  %v139 = vsub.s32 4294967266, %v134
  %v140 = vadd.s32 %v139, 127
  %v141 = vshll.u32 %v140, 23
  %v142 = vor.u32 4788187, %v141
  %v143 = vand.u32 2147483647, %v142
  %v145 = vcvt.s32.f32 %v138
  %v146 = vmul.f32 %v145, %v143
  %v147 = vxor.u32 %v146, 2147483648
  %v148 = vsel %vm27, %v147, %v146
  %v149 = vsub.s32 4, %v125
  %v150 = vsel %vm27, %v149, %v125
  %v151 = vsel %vm26, %v13, %v148
  %v152 = vsel %vm26, 0, %v150
  %v153 = vmul.f32 %v151, %v151
  %v154 = vmul.f32 %v153, -0.001358992
  %v155 = vadd.f32 %v154, 0.041655596
  %v156 = vmul.f32 %v153, %v155
  %v157 = vadd.f32 %v156, -0.4999988
  %v158 = vmul.f32 %v153, %v157
  %v159 = vadd.f32 1.0, %v158
  %v160 = vmul.f32 %v151, %v151
  %v161 = vmul.f32 %v160, -0.00019511016
  %v162 = vadd.f32 %v161, 0.008332121
  %v163 = vmul.f32 %v160, %v162
  %v164 = vadd.f32 %v163, -0.16666654
  %v165 = vmul.f32 %v160, %v164
  %v166 = vadd.f32 %v165, 1.0
  %v167 = vmul.f32 %v166, %v151
  %vm168 = vweird.f32 %v13
  %v169 = vand.u32 %v152, 3
  %vm170 = vcmp.lt.s32.totalorder %v169, 2
  %vm171 = vcmp.eq.s32.totalorder %v169, 0
  %v172 = vxor.u32 %v167, 2147483648
  %v173 = vsel %vm171, %v159, %v172
  %vm174 = vcmp.eq.s32.totalorder %v169, 2
  %v175 = vxor.u32 %v159, 2147483648
  %v176 = vsel %vm174, %v175, %v167
  %v177 = vsel %vm170, %v173, %v176
  %v178 = vsel %vm168, nan, %v177
  %v179 = vand.u32 2147483647, %v14
  %vm180 = vcmp.le.f32.partialorder %v179, 0.7853982
  %vm181 = vcmp.lt.s32.totalorder %v14, 0
  %v182 = vand.u32 %v14, 2139095040
  %v183 = vshrl.u32 %v182, 23
  %v184 = vsub.s32 %v183, 127
  %v185 = vand.u32 2147483647, %v14
  %v186 = vand.u32 %v185, 8388607
  %v187 = vor.u32 %v186, 8388608
  %v188 = vsub.s32 0, %v187
  %v189 = vadd.s32 %v184, 1
  %vm190 = vcmp.gt.s32.totalorder %v189, 0
  %v191 = vsel %vm190, %v189, 0
  %v192 = vshrl.u32 %v191, 5
  %v193 = vand.u32 %v191, 31
  %v194 = vsub.s32 32, %v193
  %v195 = vshrl.u32 683565275, %v194
  %v196 = vshll.u32 683565275, %v193
  %v197 = vshrl.u32 2475754826, %v194
  %v198 = vor.u32 %v196, %v197
  %v199 = vshll.u32 2475754826, %v193
  %v200 = vshrl.u32 2131351028, %v194
  %v201 = vor.u32 %v199, %v200
  %v202 = vshll.u32 2131351028, %v193
  %v203 = vshrl.u32 2102212464, %v194
  %v204 = vor.u32 %v202, %v203
  %v205 = vshll.u32 2102212464, %v193
  %v206 = vshrl.u32 920167782, %v194
  %v207 = vor.u32 %v205, %v206
  %v208 = vshll.u32 920167782, %v193
  %v209 = vshrl.u32 1326507024, %v194
  %v210 = vor.u32 %v208, %v209
  %vm211 = vcmp.lt.s32.totalorder %v192, 1
  %vm212 = vcmp.lt.s32.totalorder %v192, 2
  %vm213 = vcmp.lt.s32.totalorder %v192, 3
  %vm214 = vcmp.lt.s32.totalorder %v192, 4
  %v215 = vsel %vm211, %v195, %v198
  %v216 = vsel %vm214, %v204, 2102212464
  %v217 = vsel %vm213, %v201, %v216
  %v218 = vsel %vm212, %v215, %v217
  %v219 = vsel %vm211, %v198, %v201
  %v220 = vsel %vm214, %v207, 920167782
  %v221 = vsel %vm213, %v204, %v220
  %v222 = vsel %vm212, %v219, %v221
  %v223 = vsel %vm211, %v201, %v204
  %v224 = vsel %vm214, %v210, 1326507024
  %v225 = vsel %vm213, %v207, %v224
  %v226 = vsel %vm212, %v223, %v225
  %v227 = vshll.u32 %v187, 8
  %v228 = vand.u32 %v227, 65535
  %v229 = vshrl.u32 %v227, 16
  %v230 = vand.u32 %v226, 65535
  %v231 = vshrl.u32 %v226, 16
  %v232 = vmul.u32 %v228, %v230
  %v233 = vmul.u32 %v228, %v231
  %v234 = vmul.u32 %v229, %v230
  %v235 = vmul.u32 %v229, %v231
  %v236 = vshll.u32 %v233, 16
  %v237 = vshrl.u32 %v233, 16
  %v238 = vshll.u32 %v234, 16
  %v239 = vshrl.u32 %v234, 16
  %vm240 = vc.u32 %v232, %v236
  %v241 = vsel %vm240, 1, 0
  %v242 = vadd.s32 %v232, %v236
  %v243 = vadd.s32 %v235, %v241
  %vm244 = vc.u32 %v242, %v238
  %v245 = vsel %vm244, 1, 0
  %v246 = vadd.s32 %v242, %v238
  %v247 = vadd.s32 %v243, %v245
  %v248 = vadd.s32 %v247, %v237
  %v249 = vadd.s32 %v248, %v239
  %v250 = vand.u32 %v227, 65535
  %v251 = vshrl.u32 %v227, 16
  %v252 = vand.u32 %v222, 65535
  %v253 = vshrl.u32 %v222, 16
  %v254 = vmul.u32 %v250, %v252
  %v255 = vmul.u32 %v250, %v253
  %v256 = vmul.u32 %v251, %v252
  %v257 = vmul.u32 %v251, %v253
  %v258 = vshll.u32 %v255, 16
  %v259 = vshrl.u32 %v255, 16
  %v260 = vshll.u32 %v256, 16
  %v261 = vshrl.u32 %v256, 16
  %vm262 = vc.u32 %v254, %v258
  %v263 = vsel %vm262, 1, 0
  %v264 = vadd.s32 %v254, %v258
  %v265 = vadd.s32 %v257, %v263
  %vm266 = vc.u32 %v264, %v260
  %v267 = vsel %vm266, 1, 0
  %v268 = vadd.s32 %v264, %v260
  %v269 = vadd.s32 %v265, %v267
  %v270 = vadd.s32 %v269, %v259
  %v271 = vadd.s32 %v270, %v261
  %v272 = vmul.u32 %v227, %v218
  %v273 = vadd.s32 %v249, %v268
  %vm274 = vc.u32 %v249, %v268
  %v275 = vadd.s32 %v271, 1
  %v276 = vsel %vm274, %v275, %v271
  %v277 = vadd.s32 %v272, %v276
  %v278 = vadd.s32 %v277, 536870912
  %v279 = vshrl.u32 %v278, 30
  %v280 = vshll.u32 %v279, 30
  %v281 = vsub.s32 %v277, %v280
  %vm282 = vcmp.lt.s32.totalorder %v281, 0
  %v283 = vsub.s32 0, %v281
  %v284 = vsel %vm282, %v283, %v281
  %v285 = vclz %v284
  %v286 = vsub.s32 %v285, 2
  %vm287 = vcmp.gt.s32.totalorder 0, %v286
  %v288 = vsel %vm287, 0, %v286
  %v289 = vsub.s32 32, %v288
  %v290 = vshll.u32 %v281, %v288
  %v291 = vshrl.u32 %v273, %v289
  %v292 = vor.u32 %v290, %v291
  %v293 = vsub.s32 4294967266, %v288
  %v294 = vadd.s32 %v293, 127
  %v295 = vshll.u32 %v294, 23
  %v296 = vor.u32 4788187, %v295
  %v297 = vand.u32 2147483647, %v296
  %v299 = vcvt.s32.f32 %v292
  %v300 = vmul.f32 %v299, %v297
  %v301 = vxor.u32 %v300, 2147483648
  %v302 = vsel %vm181, %v301, %v300
  %v303 = vsub.s32 4, %v279
  %v304 = vsel %vm181, %v303, %v279
  %v305 = vsel %vm180, %v14, %v302
  %v306 = vsel %vm180, 0, %v304
  %v307 = vmul.f32 %v305, %v305
  %v308 = vmul.f32 %v307, -0.001358992
  %v309 = vadd.f32 %v308, 0.041655596
  %v310 = vmul.f32 %v307, %v309
  %v311 = vadd.f32 %v310, -0.4999988
  %v312 = vmul.f32 %v307, %v311
  %v313 = vadd.f32 1.0, %v312
  %v314 = vmul.f32 %v305, %v305
  %v315 = vmul.f32 %v314, -0.00019511016
  %v316 = vadd.f32 %v315, 0.008332121
  %v317 = vmul.f32 %v314, %v316
  %v318 = vadd.f32 %v317, -0.16666654
  %v319 = vmul.f32 %v314, %v318
  %v320 = vadd.f32 %v319, 1.0
  %v321 = vmul.f32 %v320, %v305
  %vm322 = vweird.f32 %v14
  %v323 = vand.u32 %v306, 3
  %vm324 = vcmp.lt.s32.totalorder %v323, 2
  %vm325 = vcmp.eq.s32.totalorder %v323, 0
  %v326 = vxor.u32 %v321, 2147483648
  %v327 = vsel %vm325, %v313, %v326
  %vm328 = vcmp.eq.s32.totalorder %v323, 2
  %v329 = vxor.u32 %v313, 2147483648
  %v330 = vsel %vm328, %v329, %v321
  %v331 = vsel %vm324, %v327, %v330
  %v332 = vsel %vm322, nan, %v331
  %v333 = vand.u32 2147483647, %v15
  %vm334 = vcmp.le.f32.partialorder %v333, 0.7853982
  %vm335 = vcmp.lt.s32.totalorder %v15, 0
  %v336 = vand.u32 %v15, 2139095040
  %v337 = vshrl.u32 %v336, 23
  %v338 = vsub.s32 %v337, 127
  %v339 = vand.u32 2147483647, %v15
  %v340 = vand.u32 %v339, 8388607
  %v341 = vor.u32 %v340, 8388608
  %v342 = vsub.s32 0, %v341
  %v343 = vadd.s32 %v338, 1
  %vm344 = vcmp.gt.s32.totalorder %v343, 0
  %v345 = vsel %vm344, %v343, 0
  %v346 = vshrl.u32 %v345, 5
  %v347 = vand.u32 %v345, 31
  %v348 = vsub.s32 32, %v347
  %v349 = vshrl.u32 683565275, %v348
  %v350 = vshll.u32 683565275, %v347
  %v351 = vshrl.u32 2475754826, %v348
  %v352 = vor.u32 %v350, %v351
  %v353 = vshll.u32 2475754826, %v347
  %v354 = vshrl.u32 2131351028, %v348
  %v355 = vor.u32 %v353, %v354
  %v356 = vshll.u32 2131351028, %v347
  %v357 = vshrl.u32 2102212464, %v348
  %v358 = vor.u32 %v356, %v357
  %v359 = vshll.u32 2102212464, %v347
  %v360 = vshrl.u32 920167782, %v348
  %v361 = vor.u32 %v359, %v360
  %v362 = vshll.u32 920167782, %v347
  %v363 = vshrl.u32 1326507024, %v348
  %v364 = vor.u32 %v362, %v363
  %vm365 = vcmp.lt.s32.totalorder %v346, 1
  %vm366 = vcmp.lt.s32.totalorder %v346, 2
  %vm367 = vcmp.lt.s32.totalorder %v346, 3
  %vm368 = vcmp.lt.s32.totalorder %v346, 4
  %v369 = vsel %vm365, %v349, %v352
  %v370 = vsel %vm368, %v358, 2102212464
  %v371 = vsel %vm367, %v355, %v370
  %v372 = vsel %vm366, %v369, %v371
  %v373 = vsel %vm365, %v352, %v355
  %v374 = vsel %vm368, %v361, 920167782
  %v375 = vsel %vm367, %v358, %v374
  %v376 = vsel %vm366, %v373, %v375
  %v377 = vsel %vm365, %v355, %v358
  %v378 = vsel %vm368, %v364, 1326507024
  %v379 = vsel %vm367, %v361, %v378
  %v380 = vsel %vm366, %v377, %v379
  %v381 = vshll.u32 %v341, 8
  %v382 = vand.u32 %v381, 65535
  %v383 = vshrl.u32 %v381, 16
  %v384 = vand.u32 %v380, 65535
  %v385 = vshrl.u32 %v380, 16
  %v386 = vmul.u32 %v382, %v384
  %v387 = vmul.u32 %v382, %v385
  %v388 = vmul.u32 %v383, %v384
  %v389 = vmul.u32 %v383, %v385
  %v390 = vshll.u32 %v387, 16
  %v391 = vshrl.u32 %v387, 16
  %v392 = vshll.u32 %v388, 16
  %v393 = vshrl.u32 %v388, 16
  %vm394 = vc.u32 %v386, %v390
  %v395 = vsel %vm394, 1, 0
  %v396 = vadd.s32 %v386, %v390
  %v397 = vadd.s32 %v389, %v395
  %vm398 = vc.u32 %v396, %v392
  %v399 = vsel %vm398, 1, 0
  %v400 = vadd.s32 %v396, %v392
  %v401 = vadd.s32 %v397, %v399
  %v402 = vadd.s32 %v401, %v391
  %v403 = vadd.s32 %v402, %v393
  %v404 = vand.u32 %v381, 65535
  %v405 = vshrl.u32 %v381, 16
  %v406 = vand.u32 %v376, 65535
  %v407 = vshrl.u32 %v376, 16
  %v408 = vmul.u32 %v404, %v406
  %v409 = vmul.u32 %v404, %v407
  %v410 = vmul.u32 %v405, %v406
  %v411 = vmul.u32 %v405, %v407
  %v412 = vshll.u32 %v409, 16
  %v413 = vshrl.u32 %v409, 16
  %v414 = vshll.u32 %v410, 16
  %v415 = vshrl.u32 %v410, 16
  %vm416 = vc.u32 %v408, %v412
  %v417 = vsel %vm416, 1, 0
  %v418 = vadd.s32 %v408, %v412
  %v419 = vadd.s32 %v411, %v417
  %vm420 = vc.u32 %v418, %v414
  %v421 = vsel %vm420, 1, 0
  %v422 = vadd.s32 %v418, %v414
  %v423 = vadd.s32 %v419, %v421
  %v424 = vadd.s32 %v423, %v413
  %v425 = vadd.s32 %v424, %v415
  %v426 = vmul.u32 %v381, %v372
  %v427 = vadd.s32 %v403, %v422
  %vm428 = vc.u32 %v403, %v422
  %v429 = vadd.s32 %v425, 1
  %v430 = vsel %vm428, %v429, %v425
  %v431 = vadd.s32 %v426, %v430
  %v432 = vadd.s32 %v431, 536870912
  %v433 = vshrl.u32 %v432, 30
  %v434 = vshll.u32 %v433, 30
  %v435 = vsub.s32 %v431, %v434
  %vm436 = vcmp.lt.s32.totalorder %v435, 0
  %v437 = vsub.s32 0, %v435
  %v438 = vsel %vm436, %v437, %v435
  %v439 = vclz %v438
  %v440 = vsub.s32 %v439, 2
  %vm441 = vcmp.gt.s32.totalorder 0, %v440
  %v442 = vsel %vm441, 0, %v440
  %v443 = vsub.s32 32, %v442
  %v444 = vshll.u32 %v435, %v442
  %v445 = vshrl.u32 %v427, %v443
  %v446 = vor.u32 %v444, %v445
  %v447 = vsub.s32 4294967266, %v442
  %v448 = vadd.s32 %v447, 127
  %v449 = vshll.u32 %v448, 23
  %v450 = vor.u32 4788187, %v449
  %v451 = vand.u32 2147483647, %v450
  %v453 = vcvt.s32.f32 %v446
  %v454 = vmul.f32 %v453, %v451
  %v455 = vxor.u32 %v454, 2147483648
  %v456 = vsel %vm335, %v455, %v454
  %v457 = vsub.s32 4, %v433
  %v458 = vsel %vm335, %v457, %v433
  %v459 = vsel %vm334, %v15, %v456
  %v460 = vsel %vm334, 0, %v458
  %v461 = vmul.f32 %v459, %v459
  %v462 = vmul.f32 %v461, -0.001358992
  %v463 = vadd.f32 %v462, 0.041655596
  %v464 = vmul.f32 %v461, %v463
  %v465 = vadd.f32 %v464, -0.4999988
  %v466 = vmul.f32 %v461, %v465
  %v467 = vadd.f32 1.0, %v466
  %v468 = vmul.f32 %v459, %v459
  %v469 = vmul.f32 %v468, -0.00019511016
  %v470 = vadd.f32 %v469, 0.008332121
  %v471 = vmul.f32 %v468, %v470
  %v472 = vadd.f32 %v471, -0.16666654
  %v473 = vmul.f32 %v468, %v472
  %v474 = vadd.f32 %v473, 1.0
  %v475 = vmul.f32 %v474, %v459
  %vm476 = vweird.f32 %v15
  %v477 = vand.u32 %v460, 3
  %vm478 = vcmp.lt.s32.totalorder %v477, 2
  %vm479 = vcmp.eq.s32.totalorder %v477, 0
  %v480 = vxor.u32 %v475, 2147483648
  %v481 = vsel %vm479, %v467, %v480
  %vm482 = vcmp.eq.s32.totalorder %v477, 2
  %v483 = vxor.u32 %v467, 2147483648
  %v484 = vsel %vm482, %v483, %v475
  %v485 = vsel %vm478, %v481, %v484
  %v486 = vsel %vm476, nan, %v485
  %v487 = vand.u32 2147483647, %v16
  %vm488 = vcmp.le.f32.partialorder %v487, 0.7853982
  %vm489 = vcmp.lt.s32.totalorder %v16, 0
  %v490 = vand.u32 %v16, 2139095040
  %v491 = vshrl.u32 %v490, 23
  %v492 = vsub.s32 %v491, 127
  %v493 = vand.u32 2147483647, %v16
  %v494 = vand.u32 %v493, 8388607
  %v495 = vor.u32 %v494, 8388608
  %v496 = vsub.s32 0, %v495
  %v497 = vadd.s32 %v492, 1
  %vm498 = vcmp.gt.s32.totalorder %v497, 0
  %v499 = vsel %vm498, %v497, 0
  %v500 = vshrl.u32 %v499, 5
  %v501 = vand.u32 %v499, 31
  %v502 = vsub.s32 32, %v501
  %v503 = vshrl.u32 683565275, %v502
  %v504 = vshll.u32 683565275, %v501
  %v505 = vshrl.u32 2475754826, %v502
  %v506 = vor.u32 %v504, %v505
  %v507 = vshll.u32 2475754826, %v501
  %v508 = vshrl.u32 2131351028, %v502
  %v509 = vor.u32 %v507, %v508
  %v510 = vshll.u32 2131351028, %v501
  %v511 = vshrl.u32 2102212464, %v502
  %v512 = vor.u32 %v510, %v511
  %v513 = vshll.u32 2102212464, %v501
  %v514 = vshrl.u32 920167782, %v502
  %v515 = vor.u32 %v513, %v514
  %v516 = vshll.u32 920167782, %v501
  %v517 = vshrl.u32 1326507024, %v502
  %v518 = vor.u32 %v516, %v517
  %vm519 = vcmp.lt.s32.totalorder %v500, 1
  %vm520 = vcmp.lt.s32.totalorder %v500, 2
  %vm521 = vcmp.lt.s32.totalorder %v500, 3
  %vm522 = vcmp.lt.s32.totalorder %v500, 4
  %v523 = vsel %vm519, %v503, %v506
  %v524 = vsel %vm522, %v512, 2102212464
  %v525 = vsel %vm521, %v509, %v524
  %v526 = vsel %vm520, %v523, %v525
  %v527 = vsel %vm519, %v506, %v509
  %v528 = vsel %vm522, %v515, 920167782
  %v529 = vsel %vm521, %v512, %v528
  %v530 = vsel %vm520, %v527, %v529
  %v531 = vsel %vm519, %v509, %v512
  %v532 = vsel %vm522, %v518, 1326507024
  %v533 = vsel %vm521, %v515, %v532
  %v534 = vsel %vm520, %v531, %v533
  %v535 = vshll.u32 %v495, 8
  %v536 = vand.u32 %v535, 65535
  %v537 = vshrl.u32 %v535, 16
  %v538 = vand.u32 %v534, 65535
  %v539 = vshrl.u32 %v534, 16
  %v540 = vmul.u32 %v536, %v538
  %v541 = vmul.u32 %v536, %v539
  %v542 = vmul.u32 %v537, %v538
  %v543 = vmul.u32 %v537, %v539
  %v544 = vshll.u32 %v541, 16
  %v545 = vshrl.u32 %v541, 16
  %v546 = vshll.u32 %v542, 16
  %v547 = vshrl.u32 %v542, 16
  %vm548 = vc.u32 %v540, %v544
  %v549 = vsel %vm548, 1, 0
  %v550 = vadd.s32 %v540, %v544
  %v551 = vadd.s32 %v543, %v549
  %vm552 = vc.u32 %v550, %v546
  %v553 = vsel %vm552, 1, 0
  %v554 = vadd.s32 %v550, %v546
  %v555 = vadd.s32 %v551, %v553
  %v556 = vadd.s32 %v555, %v545
  %v557 = vadd.s32 %v556, %v547
  %v558 = vand.u32 %v535, 65535
  %v559 = vshrl.u32 %v535, 16
  %v560 = vand.u32 %v530, 65535
  %v561 = vshrl.u32 %v530, 16
  %v562 = vmul.u32 %v558, %v560
  %v563 = vmul.u32 %v558, %v561
  %v564 = vmul.u32 %v559, %v560
  %v565 = vmul.u32 %v559, %v561
  %v566 = vshll.u32 %v563, 16
  %v567 = vshrl.u32 %v563, 16
  %v568 = vshll.u32 %v564, 16
  %v569 = vshrl.u32 %v564, 16
  %vm570 = vc.u32 %v562, %v566
  %v571 = vsel %vm570, 1, 0
  %v572 = vadd.s32 %v562, %v566
  %v573 = vadd.s32 %v565, %v571
  %vm574 = vc.u32 %v572, %v568
  %v575 = vsel %vm574, 1, 0
  %v576 = vadd.s32 %v572, %v568
  %v577 = vadd.s32 %v573, %v575
  %v578 = vadd.s32 %v577, %v567
  %v579 = vadd.s32 %v578, %v569
  %v580 = vmul.u32 %v535, %v526
  %v581 = vadd.s32 %v557, %v576
  %vm582 = vc.u32 %v557, %v576
  %v583 = vadd.s32 %v579, 1
  %v584 = vsel %vm582, %v583, %v579
  %v585 = vadd.s32 %v580, %v584
  %v586 = vadd.s32 %v585, 536870912
  %v587 = vshrl.u32 %v586, 30
  %v588 = vshll.u32 %v587, 30
  %v589 = vsub.s32 %v585, %v588
  %vm590 = vcmp.lt.s32.totalorder %v589, 0
  %v591 = vsub.s32 0, %v589
  %v592 = vsel %vm590, %v591, %v589
  %v593 = vclz %v592
  %v594 = vsub.s32 %v593, 2
  %vm595 = vcmp.gt.s32.totalorder 0, %v594
  %v596 = vsel %vm595, 0, %v594
  %v597 = vsub.s32 32, %v596
  %v598 = vshll.u32 %v589, %v596
  %v599 = vshrl.u32 %v581, %v597
  %v600 = vor.u32 %v598, %v599
  %v601 = vsub.s32 4294967266, %v596
  %v602 = vadd.s32 %v601, 127
  %v603 = vshll.u32 %v602, 23
  %v604 = vor.u32 4788187, %v603
  %v605 = vand.u32 2147483647, %v604
  %v607 = vcvt.s32.f32 %v600
  %v608 = vmul.f32 %v607, %v605
  %v609 = vxor.u32 %v608, 2147483648
  %v610 = vsel %vm489, %v609, %v608
  %v611 = vsub.s32 4, %v587
  %v612 = vsel %vm489, %v611, %v587
  %v613 = vsel %vm488, %v16, %v610
  %v614 = vsel %vm488, 0, %v612
  %v615 = vmul.f32 %v613, %v613
  %v616 = vmul.f32 %v615, -0.001358992
  %v617 = vadd.f32 %v616, 0.041655596
  %v618 = vmul.f32 %v615, %v617
  %v619 = vadd.f32 %v618, -0.4999988
  %v620 = vmul.f32 %v615, %v619
  %v621 = vadd.f32 1.0, %v620
  %v622 = vmul.f32 %v613, %v613
  %v623 = vmul.f32 %v622, -0.00019511016
  %v624 = vadd.f32 %v623, 0.008332121
  %v625 = vmul.f32 %v622, %v624
  %v626 = vadd.f32 %v625, -0.16666654
  %v627 = vmul.f32 %v622, %v626
  %v628 = vadd.f32 %v627, 1.0
  %v629 = vmul.f32 %v628, %v613
  %vm630 = vweird.f32 %v16
  %v631 = vand.u32 %v614, 3
  %vm632 = vcmp.lt.s32.totalorder %v631, 2
  %vm633 = vcmp.eq.s32.totalorder %v631, 0
  %v634 = vxor.u32 %v629, 2147483648
  %v635 = vsel %vm633, %v621, %v634
  %vm636 = vcmp.eq.s32.totalorder %v631, 2
  %v637 = vxor.u32 %v621, 2147483648
  %v638 = vsel %vm636, %v637, %v629
  %v639 = vsel %vm632, %v635, %v638
  %v640 = vsel %vm630, nan, %v639
  %v641 = vmul.f32 %v18, %v178
  %v642 = vmul.f32 %v20, %v332
  %v643 = vmul.f32 %v22, %v486
  %v644 = vmul.f32 %v24, %v640
  %645 = vst [vmem:[%s1] sm:$0xff] %v641
  %646 = vst [vmem:[%s1 + $0x8] sm:$0xff] %v642
  %647 = vst [vmem:[%s1 + $0x10] sm:$0xff] %v643
  %648 = vst [vmem:[%s1 + $0x18] sm:$0xff] %v644
  %v649 = vand.u32 2147483647, %v13
  %vm650 = vcmp.le.f32.partialorder %v649, 0.7853982
  %vm651 = vcmp.lt.s32.totalorder %v13, 0
  %v652 = vand.u32 %v13, 2139095040
  %v653 = vshrl.u32 %v652, 23
  %v654 = vsub.s32 %v653, 127
  %v655 = vand.u32 2147483647, %v13
  %v656 = vand.u32 %v655, 8388607
  %v657 = vor.u32 %v656, 8388608
  %v658 = vsub.s32 0, %v657
  %v659 = vadd.s32 %v654, 1
  %vm660 = vcmp.gt.s32.totalorder %v659, 0
  %v661 = vsel %vm660, %v659, 0
  %v662 = vshrl.u32 %v661, 5
  %v663 = vand.u32 %v661, 31
  %v664 = vsub.s32 32, %v663
  %v665 = vshrl.u32 683565275, %v664
  %v666 = vshll.u32 683565275, %v663
  %v667 = vshrl.u32 2475754826, %v664
  %v668 = vor.u32 %v666, %v667
  %v669 = vshll.u32 2475754826, %v663
  %v670 = vshrl.u32 2131351028, %v664
  %v671 = vor.u32 %v669, %v670
  %v672 = vshll.u32 2131351028, %v663
  %v673 = vshrl.u32 2102212464, %v664
  %v674 = vor.u32 %v672, %v673
  %v675 = vshll.u32 2102212464, %v663
  %v676 = vshrl.u32 920167782, %v664
  %v677 = vor.u32 %v675, %v676
  %v678 = vshll.u32 920167782, %v663
  %v679 = vshrl.u32 1326507024, %v664
  %v680 = vor.u32 %v678, %v679
  %vm681 = vcmp.lt.s32.totalorder %v662, 1
  %vm682 = vcmp.lt.s32.totalorder %v662, 2
  %vm683 = vcmp.lt.s32.totalorder %v662, 3
  %vm684 = vcmp.lt.s32.totalorder %v662, 4
  %v685 = vsel %vm681, %v665, %v668
  %v686 = vsel %vm684, %v674, 2102212464
  %v687 = vsel %vm683, %v671, %v686
  %v688 = vsel %vm682, %v685, %v687
  %v689 = vsel %vm681, %v668, %v671
  %v690 = vsel %vm684, %v677, 920167782
  %v691 = vsel %vm683, %v674, %v690
  %v692 = vsel %vm682, %v689, %v691
  %v693 = vsel %vm681, %v671, %v674
  %v694 = vsel %vm684, %v680, 1326507024
  %v695 = vsel %vm683, %v677, %v694
  %v696 = vsel %vm682, %v693, %v695
  %v697 = vshll.u32 %v657, 8
  %v698 = vand.u32 %v697, 65535
  %v699 = vshrl.u32 %v697, 16
  %v700 = vand.u32 %v696, 65535
  %v701 = vshrl.u32 %v696, 16
  %v702 = vmul.u32 %v698, %v700
  %v703 = vmul.u32 %v698, %v701
  %v704 = vmul.u32 %v699, %v700
  %v705 = vmul.u32 %v699, %v701
  %v706 = vshll.u32 %v703, 16
  %v707 = vshrl.u32 %v703, 16
  %v708 = vshll.u32 %v704, 16
  %v709 = vshrl.u32 %v704, 16
  %vm710 = vc.u32 %v702, %v706
  %v711 = vsel %vm710, 1, 0
  %v712 = vadd.s32 %v702, %v706
  %v713 = vadd.s32 %v705, %v711
  %vm714 = vc.u32 %v712, %v708
  %v715 = vsel %vm714, 1, 0
  %v716 = vadd.s32 %v712, %v708
  %v717 = vadd.s32 %v713, %v715
  %v718 = vadd.s32 %v717, %v707
  %v719 = vadd.s32 %v718, %v709
  %v720 = vand.u32 %v697, 65535
  %v721 = vshrl.u32 %v697, 16
  %v722 = vand.u32 %v692, 65535
  %v723 = vshrl.u32 %v692, 16
  %v724 = vmul.u32 %v720, %v722
  %v725 = vmul.u32 %v720, %v723
  %v726 = vmul.u32 %v721, %v722
  %v727 = vmul.u32 %v721, %v723
  %v728 = vshll.u32 %v725, 16
  %v729 = vshrl.u32 %v725, 16
  %v730 = vshll.u32 %v726, 16
  %v731 = vshrl.u32 %v726, 16
  %vm732 = vc.u32 %v724, %v728
  %v733 = vsel %vm732, 1, 0
  %v734 = vadd.s32 %v724, %v728
  %v735 = vadd.s32 %v727, %v733
  %vm736 = vc.u32 %v734, %v730
  %v737 = vsel %vm736, 1, 0
  %v738 = vadd.s32 %v734, %v730
  %v739 = vadd.s32 %v735, %v737
  %v740 = vadd.s32 %v739, %v729
  %v741 = vadd.s32 %v740, %v731
  %v742 = vmul.u32 %v697, %v688
  %v743 = vadd.s32 %v719, %v738
  %vm744 = vc.u32 %v719, %v738
  %v745 = vadd.s32 %v741, 1
  %v746 = vsel %vm744, %v745, %v741
  %v747 = vadd.s32 %v742, %v746
  %v748 = vadd.s32 %v747, 536870912
  %v749 = vshrl.u32 %v748, 30
  %v750 = vshll.u32 %v749, 30
  %v751 = vsub.s32 %v747, %v750
  %vm752 = vcmp.lt.s32.totalorder %v751, 0
  %v753 = vsub.s32 0, %v751
  %v754 = vsel %vm752, %v753, %v751
  %v755 = vclz %v754
  %v756 = vsub.s32 %v755, 2
  %vm757 = vcmp.gt.s32.totalorder 0, %v756
  %v758 = vsel %vm757, 0, %v756
  %v759 = vsub.s32 32, %v758
  %v760 = vshll.u32 %v751, %v758
  %v761 = vshrl.u32 %v743, %v759
  %v762 = vor.u32 %v760, %v761
  %v763 = vsub.s32 4294967266, %v758
  %v764 = vadd.s32 %v763, 127
  %v765 = vshll.u32 %v764, 23
  %v766 = vor.u32 4788187, %v765
  %v767 = vand.u32 2147483647, %v766
  %v769 = vcvt.s32.f32 %v762
  %v770 = vmul.f32 %v769, %v767
  %v771 = vxor.u32 %v770, 2147483648
  %v772 = vsel %vm651, %v771, %v770
  %v773 = vsub.s32 4, %v749
  %v774 = vsel %vm651, %v773, %v749
  %v775 = vsel %vm650, %v13, %v772
  %v776 = vsel %vm650, 0, %v774
  %v777 = vmul.f32 %v775, %v775
  %v778 = vmul.f32 %v777, -0.001358992
  %v779 = vadd.f32 %v778, 0.041655596
  %v780 = vmul.f32 %v777, %v779
  %v781 = vadd.f32 %v780, -0.4999988
  %v782 = vmul.f32 %v777, %v781
  %v783 = vadd.f32 1.0, %v782
  %v784 = vmul.f32 %v775, %v775
  %v785 = vmul.f32 %v784, -0.00019511016
  %v786 = vadd.f32 %v785, 0.008332121
  %v787 = vmul.f32 %v784, %v786
  %v788 = vadd.f32 %v787, -0.16666654
  %v789 = vmul.f32 %v784, %v788
  %v790 = vadd.f32 %v789, 1.0
  %v791 = vmul.f32 %v790, %v775
  %vm792 = vweird.f32 %v13
  %v793 = vadd.s32 %v776, 3
  %v794 = vand.u32 %v793, 3
  %vm795 = vcmp.lt.s32.totalorder %v794, 2
  %vm796 = vcmp.eq.s32.totalorder %v794, 0
  %v797 = vxor.u32 %v791, 2147483648
  %v798 = vsel %vm796, %v783, %v797
  %vm799 = vcmp.eq.s32.totalorder %v794, 2
  %v800 = vxor.u32 %v783, 2147483648
  %v801 = vsel %vm799, %v800, %v791
  %v802 = vsel %vm795, %v798, %v801
  %v803 = vsel %vm792, nan, %v802
  %v804 = vand.u32 2147483647, %v14
  %vm805 = vcmp.le.f32.partialorder %v804, 0.7853982
  %vm806 = vcmp.lt.s32.totalorder %v14, 0
  %v807 = vand.u32 %v14, 2139095040
  %v808 = vshrl.u32 %v807, 23
  %v809 = vsub.s32 %v808, 127
  %v810 = vand.u32 2147483647, %v14
  %v811 = vand.u32 %v810, 8388607
  %v812 = vor.u32 %v811, 8388608
  %v813 = vsub.s32 0, %v812
  %v814 = vadd.s32 %v809, 1
  %vm815 = vcmp.gt.s32.totalorder %v814, 0
  %v816 = vsel %vm815, %v814, 0
  %v817 = vshrl.u32 %v816, 5
  %v818 = vand.u32 %v816, 31
  %v819 = vsub.s32 32, %v818
  %v820 = vshrl.u32 683565275, %v819
  %v821 = vshll.u32 683565275, %v818
  %v822 = vshrl.u32 2475754826, %v819
  %v823 = vor.u32 %v821, %v822
  %v824 = vshll.u32 2475754826, %v818
  %v825 = vshrl.u32 2131351028, %v819
  %v826 = vor.u32 %v824, %v825
  %v827 = vshll.u32 2131351028, %v818
  %v828 = vshrl.u32 2102212464, %v819
  %v829 = vor.u32 %v827, %v828
  %v830 = vshll.u32 2102212464, %v818
  %v831 = vshrl.u32 920167782, %v819
  %v832 = vor.u32 %v830, %v831
  %v833 = vshll.u32 920167782, %v818
  %v834 = vshrl.u32 1326507024, %v819
  %v835 = vor.u32 %v833, %v834
  %vm836 = vcmp.lt.s32.totalorder %v817, 1
  %vm837 = vcmp.lt.s32.totalorder %v817, 2
  %vm838 = vcmp.lt.s32.totalorder %v817, 3
  %vm839 = vcmp.lt.s32.totalorder %v817, 4
  %v840 = vsel %vm836, %v820, %v823
  %v841 = vsel %vm839, %v829, 2102212464
  %v842 = vsel %vm838, %v826, %v841
  %v843 = vsel %vm837, %v840, %v842
  %v844 = vsel %vm836, %v823, %v826
  %v845 = vsel %vm839, %v832, 920167782
  %v846 = vsel %vm838, %v829, %v845
  %v847 = vsel %vm837, %v844, %v846
  %v848 = vsel %vm836, %v826, %v829
  %v849 = vsel %vm839, %v835, 1326507024
  %v850 = vsel %vm838, %v832, %v849
  %v851 = vsel %vm837, %v848, %v850
  %v852 = vshll.u32 %v812, 8
  %v853 = vand.u32 %v852, 65535
  %v854 = vshrl.u32 %v852, 16
  %v855 = vand.u32 %v851, 65535
  %v856 = vshrl.u32 %v851, 16
  %v857 = vmul.u32 %v853, %v855
  %v858 = vmul.u32 %v853, %v856
  %v859 = vmul.u32 %v854, %v855
  %v860 = vmul.u32 %v854, %v856
  %v861 = vshll.u32 %v858, 16
  %v862 = vshrl.u32 %v858, 16
  %v863 = vshll.u32 %v859, 16
  %v864 = vshrl.u32 %v859, 16
  %vm865 = vc.u32 %v857, %v861
  %v866 = vsel %vm865, 1, 0
  %v867 = vadd.s32 %v857, %v861
  %v868 = vadd.s32 %v860, %v866
  %vm869 = vc.u32 %v867, %v863
  %v870 = vsel %vm869, 1, 0
  %v871 = vadd.s32 %v867, %v863
  %v872 = vadd.s32 %v868, %v870
  %v873 = vadd.s32 %v872, %v862
  %v874 = vadd.s32 %v873, %v864
  %v875 = vand.u32 %v852, 65535
  %v876 = vshrl.u32 %v852, 16
  %v877 = vand.u32 %v847, 65535
  %v878 = vshrl.u32 %v847, 16
  %v879 = vmul.u32 %v875, %v877
  %v880 = vmul.u32 %v875, %v878
  %v881 = vmul.u32 %v876, %v877
  %v882 = vmul.u32 %v876, %v878
  %v883 = vshll.u32 %v880, 16
  %v884 = vshrl.u32 %v880, 16
  %v885 = vshll.u32 %v881, 16
  %v886 = vshrl.u32 %v881, 16
  %vm887 = vc.u32 %v879, %v883
  %v888 = vsel %vm887, 1, 0
  %v889 = vadd.s32 %v879, %v883
  %v890 = vadd.s32 %v882, %v888
  %vm891 = vc.u32 %v889, %v885
  %v892 = vsel %vm891, 1, 0
  %v893 = vadd.s32 %v889, %v885
  %v894 = vadd.s32 %v890, %v892
  %v895 = vadd.s32 %v894, %v884
  %v896 = vadd.s32 %v895, %v886
  %v897 = vmul.u32 %v852, %v843
  %v898 = vadd.s32 %v874, %v893
  %vm899 = vc.u32 %v874, %v893
  %v900 = vadd.s32 %v896, 1
  %v901 = vsel %vm899, %v900, %v896
  %v902 = vadd.s32 %v897, %v901
  %v903 = vadd.s32 %v902, 536870912
  %v904 = vshrl.u32 %v903, 30
  %v905 = vshll.u32 %v904, 30
  %v906 = vsub.s32 %v902, %v905
  %vm907 = vcmp.lt.s32.totalorder %v906, 0
  %v908 = vsub.s32 0, %v906
  %v909 = vsel %vm907, %v908, %v906
  %v910 = vclz %v909
  %v911 = vsub.s32 %v910, 2
  %vm912 = vcmp.gt.s32.totalorder 0, %v911
  %v913 = vsel %vm912, 0, %v911
  %v914 = vsub.s32 32, %v913
  %v915 = vshll.u32 %v906, %v913
  %v916 = vshrl.u32 %v898, %v914
  %v917 = vor.u32 %v915, %v916
  %v918 = vsub.s32 4294967266, %v913
  %v919 = vadd.s32 %v918, 127
  %v920 = vshll.u32 %v919, 23
  %v921 = vor.u32 4788187, %v920
  %v922 = vand.u32 2147483647, %v921
  %v924 = vcvt.s32.f32 %v917
  %v925 = vmul.f32 %v924, %v922
  %v926 = vxor.u32 %v925, 2147483648
  %v927 = vsel %vm806, %v926, %v925
  %v928 = vsub.s32 4, %v904
  %v929 = vsel %vm806, %v928, %v904
  %v930 = vsel %vm805, %v14, %v927
  %v931 = vsel %vm805, 0, %v929
  %v932 = vmul.f32 %v930, %v930
  %v933 = vmul.f32 %v932, -0.001358992
  %v934 = vadd.f32 %v933, 0.041655596
  %v935 = vmul.f32 %v932, %v934
  %v936 = vadd.f32 %v935, -0.4999988
  %v937 = vmul.f32 %v932, %v936
  %v938 = vadd.f32 1.0, %v937
  %v939 = vmul.f32 %v930, %v930
  %v940 = vmul.f32 %v939, -0.00019511016
  %v941 = vadd.f32 %v940, 0.008332121
  %v942 = vmul.f32 %v939, %v941
  %v943 = vadd.f32 %v942, -0.16666654
  %v944 = vmul.f32 %v939, %v943
  %v945 = vadd.f32 %v944, 1.0
  %v946 = vmul.f32 %v945, %v930
  %vm947 = vweird.f32 %v14
  %v948 = vadd.s32 %v931, 3
  %v949 = vand.u32 %v948, 3
  %vm950 = vcmp.lt.s32.totalorder %v949, 2
  %vm951 = vcmp.eq.s32.totalorder %v949, 0
  %v952 = vxor.u32 %v946, 2147483648
  %v953 = vsel %vm951, %v938, %v952
  %vm954 = vcmp.eq.s32.totalorder %v949, 2
  %v955 = vxor.u32 %v938, 2147483648
  %v956 = vsel %vm954, %v955, %v946
  %v957 = vsel %vm950, %v953, %v956
  %v958 = vsel %vm947, nan, %v957
  %v959 = vand.u32 2147483647, %v15
  %vm960 = vcmp.le.f32.partialorder %v959, 0.7853982
  %vm961 = vcmp.lt.s32.totalorder %v15, 0
  %v962 = vand.u32 %v15, 2139095040
  %v963 = vshrl.u32 %v962, 23
  %v964 = vsub.s32 %v963, 127
  %v965 = vand.u32 2147483647, %v15
  %v966 = vand.u32 %v965, 8388607
  %v967 = vor.u32 %v966, 8388608
  %v968 = vsub.s32 0, %v967
  %v969 = vadd.s32 %v964, 1
  %vm970 = vcmp.gt.s32.totalorder %v969, 0
  %v971 = vsel %vm970, %v969, 0
  %v972 = vshrl.u32 %v971, 5
  %v973 = vand.u32 %v971, 31
  %v974 = vsub.s32 32, %v973
  %v975 = vshrl.u32 683565275, %v974
  %v976 = vshll.u32 683565275, %v973
  %v977 = vshrl.u32 2475754826, %v974
  %v978 = vor.u32 %v976, %v977
  %v979 = vshll.u32 2475754826, %v973
  %v980 = vshrl.u32 2131351028, %v974
  %v981 = vor.u32 %v979, %v980
  %v982 = vshll.u32 2131351028, %v973
  %v983 = vshrl.u32 2102212464, %v974
  %v984 = vor.u32 %v982, %v983
  %v985 = vshll.u32 2102212464, %v973
  %v986 = vshrl.u32 920167782, %v974
  %v987 = vor.u32 %v985, %v986
  %v988 = vshll.u32 920167782, %v973
  %v989 = vshrl.u32 1326507024, %v974
  %v990 = vor.u32 %v988, %v989
  %vm991 = vcmp.lt.s32.totalorder %v972, 1
  %vm992 = vcmp.lt.s32.totalorder %v972, 2
  %vm993 = vcmp.lt.s32.totalorder %v972, 3
  %vm994 = vcmp.lt.s32.totalorder %v972, 4
  %v995 = vsel %vm991, %v975, %v978
  %v996 = vsel %vm994, %v984, 2102212464
  %v997 = vsel %vm993, %v981, %v996
  %v998 = vsel %vm992, %v995, %v997
  %v999 = vsel %vm991, %v978, %v981
  %v1000 = vsel %vm994, %v987, 920167782
  %v1001 = vsel %vm993, %v984, %v1000
  %v1002 = vsel %vm992, %v999, %v1001
  %v1003 = vsel %vm991, %v981, %v984
  %v1004 = vsel %vm994, %v990, 1326507024
  %v1005 = vsel %vm993, %v987, %v1004
  %v1006 = vsel %vm992, %v1003, %v1005
  %v1007 = vshll.u32 %v967, 8
  %v1008 = vand.u32 %v1007, 65535
  %v1009 = vshrl.u32 %v1007, 16
  %v1010 = vand.u32 %v1006, 65535
  %v1011 = vshrl.u32 %v1006, 16
  %v1012 = vmul.u32 %v1008, %v1010
  %v1013 = vmul.u32 %v1008, %v1011
  %v1014 = vmul.u32 %v1009, %v1010
  %v1015 = vmul.u32 %v1009, %v1011
  %v1016 = vshll.u32 %v1013, 16
  %v1017 = vshrl.u32 %v1013, 16
  %v1018 = vshll.u32 %v1014, 16
  %v1019 = vshrl.u32 %v1014, 16
  %vm1020 = vc.u32 %v1012, %v1016
  %v1021 = vsel %vm1020, 1, 0
  %v1022 = vadd.s32 %v1012, %v1016
  %v1023 = vadd.s32 %v1015, %v1021
  %vm1024 = vc.u32 %v1022, %v1018
  %v1025 = vsel %vm1024, 1, 0
  %v1026 = vadd.s32 %v1022, %v1018
  %v1027 = vadd.s32 %v1023, %v1025
  %v1028 = vadd.s32 %v1027, %v1017
  %v1029 = vadd.s32 %v1028, %v1019
  %v1030 = vand.u32 %v1007, 65535
  %v1031 = vshrl.u32 %v1007, 16
  %v1032 = vand.u32 %v1002, 65535
  %v1033 = vshrl.u32 %v1002, 16
  %v1034 = vmul.u32 %v1030, %v1032
  %v1035 = vmul.u32 %v1030, %v1033
  %v1036 = vmul.u32 %v1031, %v1032
  %v1037 = vmul.u32 %v1031, %v1033
  %v1038 = vshll.u32 %v1035, 16
  %v1039 = vshrl.u32 %v1035, 16
  %v1040 = vshll.u32 %v1036, 16
  %v1041 = vshrl.u32 %v1036, 16
  %vm1042 = vc.u32 %v1034, %v1038
  %v1043 = vsel %vm1042, 1, 0
  %v1044 = vadd.s32 %v1034, %v1038
  %v1045 = vadd.s32 %v1037, %v1043
  %vm1046 = vc.u32 %v1044, %v1040
  %v1047 = vsel %vm1046, 1, 0
  %v1048 = vadd.s32 %v1044, %v1040
  %v1049 = vadd.s32 %v1045, %v1047
  %v1050 = vadd.s32 %v1049, %v1039
  %v1051 = vadd.s32 %v1050, %v1041
  %v1052 = vmul.u32 %v1007, %v998
  %v1053 = vadd.s32 %v1029, %v1048
  %vm1054 = vc.u32 %v1029, %v1048
  %v1055 = vadd.s32 %v1051, 1
  %v1056 = vsel %vm1054, %v1055, %v1051
  %v1057 = vadd.s32 %v1052, %v1056
  %v1058 = vadd.s32 %v1057, 536870912
  %v1059 = vshrl.u32 %v1058, 30
  %v1060 = vshll.u32 %v1059, 30
  %v1061 = vsub.s32 %v1057, %v1060
  %vm1062 = vcmp.lt.s32.totalorder %v1061, 0
  %v1063 = vsub.s32 0, %v1061
  %v1064 = vsel %vm1062, %v1063, %v1061
  %v1065 = vclz %v1064
  %v1066 = vsub.s32 %v1065, 2
  %vm1067 = vcmp.gt.s32.totalorder 0, %v1066
  %v1068 = vsel %vm1067, 0, %v1066
  %v1069 = vsub.s32 32, %v1068
  %v1070 = vshll.u32 %v1061, %v1068
  %v1071 = vshrl.u32 %v1053, %v1069
  %v1072 = vor.u32 %v1070, %v1071
  %v1073 = vsub.s32 4294967266, %v1068
  %v1074 = vadd.s32 %v1073, 127
  %v1075 = vshll.u32 %v1074, 23
  %v1076 = vor.u32 4788187, %v1075
  %v1077 = vand.u32 2147483647, %v1076
  %v1079 = vcvt.s32.f32 %v1072
  %v1080 = vmul.f32 %v1079, %v1077
  %v1081 = vxor.u32 %v1080, 2147483648
  %v1082 = vsel %vm961, %v1081, %v1080
  %v1083 = vsub.s32 4, %v1059
  %v1084 = vsel %vm961, %v1083, %v1059
  %v1085 = vsel %vm960, %v15, %v1082
  %v1086 = vsel %vm960, 0, %v1084
  %v1087 = vmul.f32 %v1085, %v1085
  %v1088 = vmul.f32 %v1087, -0.001358992
  %v1089 = vadd.f32 %v1088, 0.041655596
  %v1090 = vmul.f32 %v1087, %v1089
  %v1091 = vadd.f32 %v1090, -0.4999988
  %v1092 = vmul.f32 %v1087, %v1091
  %v1093 = vadd.f32 1.0, %v1092
  %v1094 = vmul.f32 %v1085, %v1085
  %v1095 = vmul.f32 %v1094, -0.00019511016
  %v1096 = vadd.f32 %v1095, 0.008332121
  %v1097 = vmul.f32 %v1094, %v1096
  %v1098 = vadd.f32 %v1097, -0.16666654
  %v1099 = vmul.f32 %v1094, %v1098
  %v1100 = vadd.f32 %v1099, 1.0
  %v1101 = vmul.f32 %v1100, %v1085
  %vm1102 = vweird.f32 %v15
  %v1103 = vadd.s32 %v1086, 3
  %v1104 = vand.u32 %v1103, 3
  %vm1105 = vcmp.lt.s32.totalorder %v1104, 2
  %vm1106 = vcmp.eq.s32.totalorder %v1104, 0
  %v1107 = vxor.u32 %v1101, 2147483648
  %v1108 = vsel %vm1106, %v1093, %v1107
  %vm1109 = vcmp.eq.s32.totalorder %v1104, 2
  %v1110 = vxor.u32 %v1093, 2147483648
  %v1111 = vsel %vm1109, %v1110, %v1101
  %v1112 = vsel %vm1105, %v1108, %v1111
  %v1113 = vsel %vm1102, nan, %v1112
  %v1114 = vand.u32 2147483647, %v16
  %vm1115 = vcmp.le.f32.partialorder %v1114, 0.7853982
  %vm1116 = vcmp.lt.s32.totalorder %v16, 0
  %v1117 = vand.u32 %v16, 2139095040
  %v1118 = vshrl.u32 %v1117, 23
  %v1119 = vsub.s32 %v1118, 127
  %v1120 = vand.u32 2147483647, %v16
  %v1121 = vand.u32 %v1120, 8388607
  %v1122 = vor.u32 %v1121, 8388608
  %v1123 = vsub.s32 0, %v1122
  %v1124 = vadd.s32 %v1119, 1
  %vm1125 = vcmp.gt.s32.totalorder %v1124, 0
  %v1126 = vsel %vm1125, %v1124, 0
  %v1127 = vshrl.u32 %v1126, 5
  %v1128 = vand.u32 %v1126, 31
  %v1129 = vsub.s32 32, %v1128
  %v1130 = vshrl.u32 683565275, %v1129
  %v1131 = vshll.u32 683565275, %v1128
  %v1132 = vshrl.u32 2475754826, %v1129
  %v1133 = vor.u32 %v1131, %v1132
  %v1134 = vshll.u32 2475754826, %v1128
  %v1135 = vshrl.u32 2131351028, %v1129
  %v1136 = vor.u32 %v1134, %v1135
  %v1137 = vshll.u32 2131351028, %v1128
  %v1138 = vshrl.u32 2102212464, %v1129
  %v1139 = vor.u32 %v1137, %v1138
  %v1140 = vshll.u32 2102212464, %v1128
  %v1141 = vshrl.u32 920167782, %v1129
  %v1142 = vor.u32 %v1140, %v1141
  %v1143 = vshll.u32 920167782, %v1128
  %v1144 = vshrl.u32 1326507024, %v1129
  %v1145 = vor.u32 %v1143, %v1144
  %vm1146 = vcmp.lt.s32.totalorder %v1127, 1
  %vm1147 = vcmp.lt.s32.totalorder %v1127, 2
  %vm1148 = vcmp.lt.s32.totalorder %v1127, 3
  %vm1149 = vcmp.lt.s32.totalorder %v1127, 4
  %v1150 = vsel %vm1146, %v1130, %v1133
  %v1151 = vsel %vm1149, %v1139, 2102212464
  %v1152 = vsel %vm1148, %v1136, %v1151
  %v1153 = vsel %vm1147, %v1150, %v1152
  %v1154 = vsel %vm1146, %v1133, %v1136
  %v1155 = vsel %vm1149, %v1142, 920167782
  %v1156 = vsel %vm1148, %v1139, %v1155
  %v1157 = vsel %vm1147, %v1154, %v1156
  %v1158 = vsel %vm1146, %v1136, %v1139
  %v1159 = vsel %vm1149, %v1145, 1326507024
  %v1160 = vsel %vm1148, %v1142, %v1159
  %v1161 = vsel %vm1147, %v1158, %v1160
  %v1162 = vshll.u32 %v1122, 8
  %v1163 = vand.u32 %v1162, 65535
  %v1164 = vshrl.u32 %v1162, 16
  %v1165 = vand.u32 %v1161, 65535
  %v1166 = vshrl.u32 %v1161, 16
  %v1167 = vmul.u32 %v1163, %v1165
  %v1168 = vmul.u32 %v1163, %v1166
  %v1169 = vmul.u32 %v1164, %v1165
  %v1170 = vmul.u32 %v1164, %v1166
  %v1171 = vshll.u32 %v1168, 16
  %v1172 = vshrl.u32 %v1168, 16
  %v1173 = vshll.u32 %v1169, 16
  %v1174 = vshrl.u32 %v1169, 16
  %vm1175 = vc.u32 %v1167, %v1171
  %v1176 = vsel %vm1175, 1, 0
  %v1177 = vadd.s32 %v1167, %v1171
  %v1178 = vadd.s32 %v1170, %v1176
  %vm1179 = vc.u32 %v1177, %v1173
  %v1180 = vsel %vm1179, 1, 0
  %v1181 = vadd.s32 %v1177, %v1173
  %v1182 = vadd.s32 %v1178, %v1180
  %v1183 = vadd.s32 %v1182, %v1172
  %v1184 = vadd.s32 %v1183, %v1174
  %v1185 = vand.u32 %v1162, 65535
  %v1186 = vshrl.u32 %v1162, 16
  %v1187 = vand.u32 %v1157, 65535
  %v1188 = vshrl.u32 %v1157, 16
  %v1189 = vmul.u32 %v1185, %v1187
  %v1190 = vmul.u32 %v1185, %v1188
  %v1191 = vmul.u32 %v1186, %v1187
  %v1192 = vmul.u32 %v1186, %v1188
  %v1193 = vshll.u32 %v1190, 16
  %v1194 = vshrl.u32 %v1190, 16
  %v1195 = vshll.u32 %v1191, 16
  %v1196 = vshrl.u32 %v1191, 16
  %vm1197 = vc.u32 %v1189, %v1193
  %v1198 = vsel %vm1197, 1, 0
  %v1199 = vadd.s32 %v1189, %v1193
  %v1200 = vadd.s32 %v1192, %v1198
  %vm1201 = vc.u32 %v1199, %v1195
  %v1202 = vsel %vm1201, 1, 0
  %v1203 = vadd.s32 %v1199, %v1195
  %v1204 = vadd.s32 %v1200, %v1202
  %v1205 = vadd.s32 %v1204, %v1194
  %v1206 = vadd.s32 %v1205, %v1196
  %v1207 = vmul.u32 %v1162, %v1153
  %v1208 = vadd.s32 %v1184, %v1203
  %vm1209 = vc.u32 %v1184, %v1203
  %v1210 = vadd.s32 %v1206, 1
  %v1211 = vsel %vm1209, %v1210, %v1206
  %v1212 = vadd.s32 %v1207, %v1211
  %v1213 = vadd.s32 %v1212, 536870912
  %v1214 = vshrl.u32 %v1213, 30
  %v1215 = vshll.u32 %v1214, 30
  %v1216 = vsub.s32 %v1212, %v1215
  %vm1217 = vcmp.lt.s32.totalorder %v1216, 0
  %v1218 = vsub.s32 0, %v1216
  %v1219 = vsel %vm1217, %v1218, %v1216
  %v1220 = vclz %v1219
  %v1221 = vsub.s32 %v1220, 2
  %vm1222 = vcmp.gt.s32.totalorder 0, %v1221
  %v1223 = vsel %vm1222, 0, %v1221
  %v1224 = vsub.s32 32, %v1223
  %v1225 = vshll.u32 %v1216, %v1223
  %v1226 = vshrl.u32 %v1208, %v1224
  %v1227 = vor.u32 %v1225, %v1226
  %v1228 = vsub.s32 4294967266, %v1223
  %v1229 = vadd.s32 %v1228, 127
  %v1230 = vshll.u32 %v1229, 23
  %v1231 = vor.u32 4788187, %v1230
  %v1232 = vand.u32 2147483647, %v1231
  %v1234 = vcvt.s32.f32 %v1227
  %v1235 = vmul.f32 %v1234, %v1232
  %v1236 = vxor.u32 %v1235, 2147483648
  %v1237 = vsel %vm1116, %v1236, %v1235
  %v1238 = vsub.s32 4, %v1214
  %v1239 = vsel %vm1116, %v1238, %v1214
  %v1240 = vsel %vm1115, %v16, %v1237
  %v1241 = vsel %vm1115, 0, %v1239
  %v1242 = vmul.f32 %v1240, %v1240
  %v1243 = vmul.f32 %v1242, -0.001358992
  %v1244 = vadd.f32 %v1243, 0.041655596
  %v1245 = vmul.f32 %v1242, %v1244
  %v1246 = vadd.f32 %v1245, -0.4999988
  %v1247 = vmul.f32 %v1242, %v1246
  %v1248 = vadd.f32 1.0, %v1247
  %v1249 = vmul.f32 %v1240, %v1240
  %v1250 = vmul.f32 %v1249, -0.00019511016
  %v1251 = vadd.f32 %v1250, 0.008332121
  %v1252 = vmul.f32 %v1249, %v1251
  %v1253 = vadd.f32 %v1252, -0.16666654
  %v1254 = vmul.f32 %v1249, %v1253
  %v1255 = vadd.f32 %v1254, 1.0
  %v1256 = vmul.f32 %v1255, %v1240
  %vm1257 = vweird.f32 %v16
  %v1258 = vadd.s32 %v1241, 3
  %v1259 = vand.u32 %v1258, 3
  %vm1260 = vcmp.lt.s32.totalorder %v1259, 2
  %vm1261 = vcmp.eq.s32.totalorder %v1259, 0
  %v1262 = vxor.u32 %v1256, 2147483648
  %v1263 = vsel %vm1261, %v1248, %v1262
  %vm1264 = vcmp.eq.s32.totalorder %v1259, 2
  %v1265 = vxor.u32 %v1248, 2147483648
  %v1266 = vsel %vm1264, %v1265, %v1256
  %v1267 = vsel %vm1260, %v1263, %v1266
  %v1268 = vsel %vm1257, nan, %v1267
  %v1269 = vmul.f32 %v18, %v803
  %v1270 = vmul.f32 %v20, %v958
  %v1271 = vmul.f32 %v22, %v1113
  %v1272 = vmul.f32 %v24, %v1268
  %s1273 = scalar_lea.vmem %s1, 32
  %1274 = vst [vmem:[%s1273] sm:$0xff] %v1269
  %1275 = vst [vmem:[%s1273 + $0x8] sm:$0xff] %v1270
  %1276 = vst [vmem:[%s1273 + $0x10] sm:$0xff] %v1271
  %1277 = vst [vmem:[%s1273 + $0x18] sm:$0xff] %v1272
  // Predicated region
  $region6: #{_complex_exponential_impl.1} parent=0 // pred_check
    _
  $region7: #{_complex_exponential_impl.1} parent=0 // pred_check_branch
    %1279 = sbr.rel (0) target = $region9
  $region8: #{_complex_exponential_impl.1} parent=0 // pred_region
    _
  $region9: #{_complex_exponential_impl.1} parent=0 // pred_fallthru
    _
  // Predicated region
  $region10: #{_complex_exponential_impl.1} parent=0 // pred_check
    _
  $region11: #{_complex_exponential_impl.1} parent=0 // pred_check_branch
    %1281 = sbr.rel (0) target = $region13
  $region12: #{_complex_exponential_impl.1} parent=0 // pred_region
    _
  $region13: #{_complex_exponential_impl.1} parent=0 // pred_fallthru
    _

</llo_original>
